<compile_context>
chip_gen: v6e
topology: v6e:2x2x1
jax: 0.10.0
libtpu: 0.0.40
codegen_flags: <defaults>
</compile_context>

<pallas_src>
import functools

import jax
import jax.numpy as jnp
from jax.experimental import pallas as pl
from jax.experimental.pallas import tpu as pltpu


def cheb_layer_kernel(adj_ref, x_ref, w_ref, b_ref, out_ref, *,
                      k_order: int, re_norm: float, residual: bool,
                      symmetric_adj: bool):
    adj = adj_ref[...].astype(jnp.float32)          # (N, N)
    x = x_ref[...].astype(jnp.float32)              # (N, F_in)
    n, f_in = x.shape

    # --- degree normalization -------------------------------------------------
    deg_row = jnp.maximum(jnp.sum(adj, axis=1, keepdims=True), 1.0)   # (N, 1)
    norm_row = jax.lax.rsqrt(deg_row)                                 # (N, 1)

    if symmetric_adj:
        # Column degrees == row degrees; apply D^{-1/2} on the fly around the matmul so
        # no scaled N^2 copy is built (only the bf16 cast of adj feeds the MXU).
        adj_b = adj.astype(jnp.bfloat16)

        def a_norm_apply(t):                         # (N, F) f32 -> (N, F) f32
            scaled = (norm_row * t).astype(jnp.bfloat16)
            return norm_row * jnp.dot(adj_b, scaled,
                                      preferred_element_type=jnp.float32)
    else:
        deg_col = jnp.maximum(jnp.sum(adj, axis=0, keepdims=True), 1.0)   # (1, N)
        norm_col = jax.lax.rsqrt(deg_col)
        a_norm_b = (norm_row * adj * norm_col).astype(jnp.bfloat16)       # (N, N) bf16

        def a_norm_apply(t):
            return jnp.dot(a_norm_b, t.astype(jnp.bfloat16),
                           preferred_element_type=jnp.float32)

    # --- scaled-Laplacian apply without materializing L_hat or I --------------
    # L_hat = c*(I - A_norm) - I   =>   L_hat @ v = -c*(A_norm @ v) + d*v,  d = c - 1.
    c = float(re_norm)
    d = c - 1.0

    def l_hat_apply(t):
        out = -c * a_norm_apply(t)
        if d != 0.0:                                 # trace-time fast path (lambda_max == 2)
            out = out + d * t
        return out

    # --- Chebyshev recursion (state kept in f32) -------------------------------
    ts = [x]                                         # T_0
    if k_order > 1:
        t_prev = x
        t_cur = l_hat_apply(x)                       # T_1
        ts.append(t_cur)
        for _ in range(2, k_order):
            t_next = 2.0 * l_hat_apply(t_cur) - t_prev
            ts.append(t_next)
            t_prev, t_cur = t_cur, t_next

    # --- single fused projection on the MXU (lane-dense padded output) --------
    t_stack = jnp.concatenate(ts, axis=-1).astype(jnp.bfloat16)       # (N, K*F_in) bf16
    acc = jnp.dot(t_stack, w_ref[...], preferred_element_type=jnp.float32)  # (N, F_pad) f32
    acc = acc + b_ref[...]                                            # bias (1, F_pad)
    acc = jnp.maximum(acc, 0.0)                                       # ReLU

    if residual:                                     # only enabled when F_in == F_out
        f_pad = acc.shape[1]
        if f_pad > f_in:
            x_res = jnp.concatenate(
                [x, jnp.zeros((n, f_pad - f_in), jnp.float32)], axis=-1)
        else:
            x_res = x
        acc = acc + x_res

    # TODO(synk): nn.Dropout(0.5) is identity in eval mode; training-mode RNG dropout
    # (matching PyTorch RNG) is intentionally omitted.
    out_ref[...] = acc.astype(out_ref.dtype)


def cheb_layer_forward(adj, x, w, b, lambda_max=2.0, residual=True,
                       symmetric_adj=False):
    """adj (N,N) f32, x (N,F_in), w (K,F_in,F_out), b (F_out,) or (1,F_out)."""
    n, f_in = x.shape
    k_order, w_f_in, f_out = w.shape
    assert w_f_in == f_in
    if f_in != f_out:
        residual = False                   # mirrors ChebLayer.__init__
    if lambda_max is None:
        # TODO(synk): DGL estimates lambda_max from the graph spectrum when None.
        lambda_max = 2.0
    re_norm = 2.0 / float(lambda_max)

    # Lane-dense output: pad F_out up to a multiple of 128, slice it off after the call.
    f_pad = ((f_out + 127) // 128) * 128
    w_flat = w.reshape(k_order * f_in, f_out)
    b_row = jnp.asarray(b).reshape(1, f_out).astype(jnp.float32)
    if f_pad != f_out:
        w_flat = jnp.pad(w_flat, ((0, 0), (0, f_pad - f_out)))
        b_row = jnp.pad(b_row, ((0, 0), (0, f_pad - f_out)))
    w_flat = w_flat.astype(jnp.bfloat16)   # bf16 MXU operand

    # VMEM budget for the single-block kernel.
    nn_b = n * n
    est = (10 * nn_b                                   # adj f32 + a_norm f32 + bf16 operand
           + 6 * n * f_in * (k_order + 1)              # T_k f32 + bf16 stacked T
           + 2 * k_order * f_in * f_pad                # weights bf16
           + 8 * n * f_pad)                            # f32 acc + output
    vmem_limit = int(min(64 * 2**20, max(32 * 2**20, 2 * est)))

    kernel = functools.partial(
        cheb_layer_kernel, k_order=k_order, re_norm=re_norm,
        residual=residual, symmetric_adj=symmetric_adj)

    out_pad = pl.pallas_call(
        kernel,
        out_shape=jax.ShapeDtypeStruct((n, f_pad), x.dtype),
        in_specs=[
            pl.BlockSpec(memory_space=pltpu.MemorySpace.VMEM),   # adj    (N, N) f32
            pl.BlockSpec(memory_space=pltpu.MemorySpace.VMEM),   # x      (N, F_in) f32
            pl.BlockSpec(memory_space=pltpu.MemorySpace.VMEM),   # w_flat (K*F_in, F_pad) bf16
            pl.BlockSpec(memory_space=pltpu.MemorySpace.VMEM),   # b      (1, F_pad) f32
        ],
        out_specs=pl.BlockSpec(memory_space=pltpu.MemorySpace.VMEM),
        compiler_params=pltpu.CompilerParams(vmem_limit_bytes=vmem_limit),
    )(adj, x, w_flat, b_row)
    return out_pad[:, :f_out]


def ref_forward(adj, x, w, b, lambda_max=2.0, residual=True):
    """Pure-JAX f32 reference for correctness checking."""
    if x.shape[1] != w.shape[2]:
        residual = False
    deg_row = jnp.maximum(adj.sum(axis=1, keepdims=True), 1.0)
    deg_col = jnp.maximum(adj.sum(axis=0, keepdims=True), 1.0)
    a_norm = (1.0 / jnp.sqrt(deg_row)) * adj * (1.0 / jnp.sqrt(deg_col))
    eye = jnp.eye(adj.shape[0], dtype=jnp.float32)
    l_hat = (2.0 / lambda_max) * (eye - a_norm) - eye
    k_order = w.shape[0]
    t_prev = x
    out = t_prev @ w[0]
    if k_order > 1:
        t_cur = l_hat @ x
        out = out + t_cur @ w[1]
        for k in range(2, k_order):
            t_next = 2.0 * (l_hat @ t_cur) - t_prev
            out = out + t_next @ w[k]
            t_prev, t_cur = t_cur, t_next
    out = out + b.reshape(1, -1)
    out = jnp.maximum(out, 0.0)
    if residual:
        out = out + x
    return out


if __name__ == "__main__":
    # Small synthetic problem: N=16 nodes, in_feat=out_feat=32, Chebyshev order K=3.
    N, F_IN, F_OUT, K = 16, 32, 32, 3
    key = jax.random.PRNGKey(0)
    k_adj, k_x, k_w, k_b = jax.random.split(key, 4)

    # Deterministic symmetric 0/1 adjacency (no self loops).
    a_rand = jax.random.uniform(k_adj, (N, N))
    adj = (a_rand > 0.6).astype(jnp.float32)
    adj = jnp.maximum(adj, adj.T)
    adj = adj * (1.0 - jnp.eye(N, dtype=jnp.float32))

    x = jax.random.normal(k_x, (N, F_IN), dtype=jnp.float32)
    w = jax.random.normal(k_w, (K, F_IN, F_OUT), dtype=jnp.float32) * (1.0 / jnp.sqrt(K * F_IN))
    b = jax.random.normal(k_b, (1, F_OUT), dtype=jnp.float32) * 0.01

    # 1) symmetric fast path (default lambda_max = 2.0)
    out_sym = jax.block_until_ready(
        cheb_layer_forward(adj, x, w, b, lambda_max=2.0, residual=True, symmetric_adj=True))
    # 2) general path (materialized A_norm), same lambda_max
    out_gen = jax.block_until_ready(
        cheb_layer_forward(adj, x, w, b, lambda_max=2.0, residual=True, symmetric_adj=False))
    # 3) non-default lambda_max exercises the d-term of the L_hat-apply
    out_l15 = jax.block_until_ready(
        cheb_layer_forward(adj, x, w, b, lambda_max=1.5, residual=True, symmetric_adj=False))

    ref_20 = ref_forward(adj, x, w, b, lambda_max=2.0, residual=True)
    ref_15 = ref_forward(adj, x, w, b, lambda_max=1.5, residual=True)

    assert out_sym.shape == (N, F_OUT)
    assert out_gen.shape == (N, F_OUT)
    assert out_l15.shape == (N, F_OUT)

    # bf16 MXU operands (f32 accumulation) vs. pure-f32 reference -> relaxed tolerance.
    for got, exp in ((out_sym, ref_20), (out_gen, ref_20), (out_l15, ref_15)):
        err = float(jnp.max(jnp.abs(got - exp)))
        assert jnp.allclose(got, exp, atol=5e-2, rtol=5e-2), f"mismatch vs reference (max err {err})"

    print("KERNEL_OK")
</pallas_src>

<mosaic_0001>
module attributes {stable_mosaic.version = 11 : i64} {
  func.func @cheb_layer_kernel(%arg0: memref<16x16xf32, #tpu.memory_space<vmem>>, %arg1: memref<16x32xf32, #tpu.memory_space<vmem>>, %arg2: memref<96x128xbf16, #tpu.memory_space<vmem>>, %arg3: memref<1x128xf32, #tpu.memory_space<vmem>>, %arg4: memref<16x128xf32, #tpu.memory_space<vmem>>) attributes {dimension_semantics = [], scalar_prefetch = 0 : i64, scratch_operands = 0 : i64, tpu.core_type = #tpu.core_type<tc>} {
    %c0 = arith.constant 0 : index
    %c0_0 = arith.constant 0 : index
    %0 = vector.load %arg0[%c0, %c0_0] : memref<16x16xf32, #tpu.memory_space<vmem>>, vector<16x16xf32>
    %c0_1 = arith.constant 0 : index
    %c0_2 = arith.constant 0 : index
    %1 = vector.load %arg1[%c0_1, %c0_2] : memref<16x32xf32, #tpu.memory_space<vmem>>, vector<16x32xf32>
    %cst = arith.constant dense<0.000000e+00> : vector<16xf32>
    %2 = vector.multi_reduction <add>, %0, %cst [1] : vector<16x16xf32> to vector<16xf32>
    %3 = vector.shape_cast %2 : vector<16xf32> to vector<16x1xf32>
    %cst_3 = arith.constant 1.000000e+00 : f32
    %4 = vector.broadcast %cst_3 : f32 to vector<16x1xf32>
    %5 = arith.maximumf %3, %4 : vector<16x1xf32>
    %6 = math.rsqrt %5 : vector<16x1xf32>
    %7 = arith.truncf %0 : vector<16x16xf32> to vector<16x16xbf16>
    %8 = vector.broadcast %6 : vector<16x1xf32> to vector<16x32xf32>
    %9 = arith.mulf %8, %1 : vector<16x32xf32>
    %10 = arith.truncf %9 : vector<16x32xf32> to vector<16x32xbf16>
    %cst_4 = arith.constant dense<0.000000e+00> : vector<16x32xf32>
    %11 = tpu.matmul %7, %10, %cst_4 {dimension_numbers = #tpu.dot_dimension_numbers<[1], [0], [0], [1], [0, 0, 1, 1], [], []>} : vector<16x16xbf16>, vector<16x32xbf16>, vector<16x32xf32> -> vector<16x32xf32>
    %12 = vector.broadcast %6 : vector<16x1xf32> to vector<16x32xf32>
    %13 = arith.mulf %12, %11 : vector<16x32xf32>
    %cst_5 = arith.constant -1.000000e+00 : f32
    %14 = vector.broadcast %cst_5 : f32 to vector<16x32xf32>
    %15 = arith.mulf %14, %13 : vector<16x32xf32>
    %16 = vector.broadcast %6 : vector<16x1xf32> to vector<16x32xf32>
    %17 = arith.mulf %16, %15 : vector<16x32xf32>
    %18 = arith.truncf %17 : vector<16x32xf32> to vector<16x32xbf16>
    %cst_6 = arith.constant dense<0.000000e+00> : vector<16x32xf32>
    %19 = tpu.matmul %7, %18, %cst_6 {dimension_numbers = #tpu.dot_dimension_numbers<[1], [0], [0], [1], [0, 0, 1, 1], [], []>} : vector<16x16xbf16>, vector<16x32xbf16>, vector<16x32xf32> -> vector<16x32xf32>
    %20 = vector.broadcast %6 : vector<16x1xf32> to vector<16x32xf32>
    %21 = arith.mulf %20, %19 : vector<16x32xf32>
    %cst_7 = arith.constant -1.000000e+00 : f32
    %22 = vector.broadcast %cst_7 : f32 to vector<16x32xf32>
    %23 = arith.mulf %22, %21 : vector<16x32xf32>
    %cst_8 = arith.constant 2.000000e+00 : f32
    %24 = vector.broadcast %cst_8 : f32 to vector<16x32xf32>
    %25 = arith.mulf %24, %23 : vector<16x32xf32>
    %26 = arith.subf %25, %1 : vector<16x32xf32>
    %27 = tpu.concatenate %1, %15, %26 in 1 : vector<16x32xf32>, vector<16x32xf32>, vector<16x32xf32> -> vector<16x96xf32>
    %28 = arith.truncf %27 : vector<16x96xf32> to vector<16x96xbf16>
    %c0_9 = arith.constant 0 : index
    %c0_10 = arith.constant 0 : index
    %29 = vector.load %arg2[%c0_9, %c0_10] : memref<96x128xbf16, #tpu.memory_space<vmem>>, vector<96x128xbf16>
    %cst_11 = arith.constant dense<0.000000e+00> : vector<16x128xf32>
    %30 = tpu.matmul %28, %29, %cst_11 {dimension_numbers = #tpu.dot_dimension_numbers<[1], [0], [0], [1], [0, 0, 1, 1], [], []>} : vector<16x96xbf16>, vector<96x128xbf16>, vector<16x128xf32> -> vector<16x128xf32>
    %c0_12 = arith.constant 0 : index
    %c0_13 = arith.constant 0 : index
    %31 = vector.load %arg3[%c0_12, %c0_13] : memref<1x128xf32, #tpu.memory_space<vmem>>, vector<1x128xf32>
    %32 = vector.broadcast %31 : vector<1x128xf32> to vector<16x128xf32>
    %33 = arith.addf %30, %32 : vector<16x128xf32>
    %cst_14 = arith.constant 0.000000e+00 : f32
    %34 = vector.broadcast %cst_14 : f32 to vector<16x128xf32>
    %35 = arith.maximumf %33, %34 : vector<16x128xf32>
    %cst_15 = arith.constant 0.000000e+00 : f32
    %36 = vector.broadcast %cst_15 : f32 to vector<16x96xf32>
    %37 = tpu.concatenate %1, %36 in 1 : vector<16x32xf32>, vector<16x96xf32> -> vector<16x128xf32>
    %38 = arith.addf %35, %37 : vector<16x128xf32>
    %c0_16 = arith.constant 0 : index
    %c0_17 = arith.constant 0 : index
    %39 = vector.load %arg4[%c0_16, %c0_17] : memref<16x128xf32, #tpu.memory_space<vmem>>, vector<16x128xf32>
    tpu.vector_store %arg4[%c0_16, %c0_17], %38 {strides = array<i32>} : memref<16x128xf32, #tpu.memory_space<vmem>>, vector<16x128xf32>,
    return
  }
}

</mosaic_0001>

<llo_original>
// kernel: tpu_custom_call.1
$region0: #{tpu_custom_call.1}
  #allocation0 [shape = 'u32[]', space=smem, size = 0x4, offset = 0x4, fixed_abs, tag = 'smem constant byte address 0x4 - core index']
  #allocation1 [shape = 'u32[144,128]{1,0:T(1,128)}', space=vmem, size = 0x12000, scoped, tag = 'internal scratch']
  %s0 = inlined_call_operand.hbm [shape: f32[16,16], index: 0, kind: input, shape index: {}]
  %s1 = inlined_call_operand.hbm [shape: f32[16,32], index: 1, kind: input, shape index: {}]
  %s2 = inlined_call_operand.hbm [shape: bf16[96,128], index: 2, kind: input, shape index: {}]
  %s3 = inlined_call_operand.vmem [shape: f32[1,128], index: 3, kind: input, shape index: {}]
  %s4 = inlined_call_operand.hbm [shape: f32[16,128], index: 4, kind: output, shape index: {}]
  %s5 = sld [smem:[#allocation0]]
  $region38: #{tpu_custom_call.1} parent=0
    _
  %s7 = ssub.s32 1, %s5
  %s8 = scalar_select 0, %s7, %s5
  $region1: #{tpu_custom_call.1} parent=0
    #allocation2 [shape = 'u8[8192]{0}', space=vmem, size = 0x2000, scoped, tag = 'input window, operand 0, single buffered']
    #allocation3 [shape = 's32[1]{0}', space=sflag, size = 0x4, scoped, tag = 'scoped memory for tpu_custom_call.1']
    #allocation4 [shape = 's32[1]{0}', space=sflag, size = 0x4, scoped, tag = 'scoped memory for tpu_custom_call.1']
    #allocation5 [shape = 'u8[8192]{0}', space=vmem, size = 0x2000, scoped, tag = 'input window, operand 1, single buffered']
    #allocation6 [shape = 's32[1]{0}', space=sflag, size = 0x4, scoped, tag = 'scoped memory for tpu_custom_call.1']
    #allocation7 [shape = 'u8[24576]{0}', space=vmem, size = 0x6000, scoped, tag = 'input window, operand 2, single buffered']
    #allocation8 [shape = 'u8[8192]{0}', space=vmem, size = 0x2000, scoped, tag = 'output window, operand 0, single buffered']
    %9 = vsyncpa [#allocation3], 0
    %10 = vsyncpa [#allocation6], 0
    %11 = vsyncpa [#allocation4], 0
    // Predicated region
    $region2: #{tpu_custom_call.1} parent=1 // pred_check
      _
    $region3: #{tpu_custom_call.1} parent=1 // pred_check_branch
      %13 = sbr.rel (0) target = $region5
    $region4: #{tpu_custom_call.1} parent=1 // pred_region
      %s15 = ssub.s32 256, 256
      %16 = vsyncadd [#allocation3], %s15
      %s17 = sshll.u32 [#allocation2], 4
      %s18 = int_to_ptr.vmem [resolvable:$true] %s17
      %23 = dma.hbm_to_vmem [thread:$0]  %s0, 256, %s18, [#allocation3], 128, 128, 8
    $region5: #{tpu_custom_call.1} parent=1 // pred_fallthru
      _
    // Predicated region
    $region6: #{tpu_custom_call.1} parent=1 // pred_check
      _
    $region7: #{tpu_custom_call.1} parent=1 // pred_check_branch
      %25 = sbr.rel (0) target = $region9
    $region8: #{tpu_custom_call.1} parent=1 // pred_region
      %s27 = ssub.s32 256, 256
      %28 = vsyncadd [#allocation6], %s27
      %s29 = sshll.u32 [#allocation5], 4
      %s30 = int_to_ptr.vmem [resolvable:$true] %s29
      %35 = dma.hbm_to_vmem [thread:$0]  %s1, 256, %s30, [#allocation6], 128, 128, 8
    $region9: #{tpu_custom_call.1} parent=1 // pred_fallthru
      _
    // Predicated region
    $region10: #{tpu_custom_call.1} parent=1 // pred_check
      _
    $region11: #{tpu_custom_call.1} parent=1 // pred_check_branch
      %37 = sbr.rel (0) target = $region13
    $region12: #{tpu_custom_call.1} parent=1 // pred_region
      %s39 = ssub.s32 768, 768
      %40 = vsyncadd [#allocation6], %s39
      %s41 = sshll.u32 [#allocation7], 4
      %s42 = int_to_ptr.vmem [resolvable:$true] %s41
      %47 = dma.hbm_to_vmem [thread:$0]  %s2, 768, %s42, [#allocation6], 64, 64, 4
    $region13: #{tpu_custom_call.1} parent=1 // pred_fallthru
      _
    // Predicated region
    $region14: #{tpu_custom_call.1} parent=1 // pred_check
      _
    $region15: #{tpu_custom_call.1} parent=1 // pred_check_branch
      %49 = sbr.rel (0) target = $region17
    $region16: #{tpu_custom_call.1} parent=1 // pred_region
      _
    $region17: #{tpu_custom_call.1} parent=1 // pred_fallthru
      _
    // Predicated region
    $region18: #{tpu_custom_call.1} parent=1 // pred_check
      _
    $region19: #{tpu_custom_call.1} parent=1 // pred_check_branch
      %51 = sbr.rel (0) target = $region21
    $region20: #{tpu_custom_call.1} parent=1 // pred_region
      %52 = dma.done [#allocation3], 256
    $region21: #{tpu_custom_call.1} parent=1 // pred_fallthru
      _
    // Predicated region
    $region22: #{tpu_custom_call.1} parent=1 // pred_check
      _
    $region23: #{tpu_custom_call.1} parent=1 // pred_check_branch
      %54 = sbr.rel (0) target = $region25
    $region24: #{tpu_custom_call.1} parent=1 // pred_region
      %55 = dma.done [#allocation6], 256
    $region25: #{tpu_custom_call.1} parent=1 // pred_fallthru
      _
    // Predicated region
    $region26: #{tpu_custom_call.1} parent=1 // pred_check
      _
    $region27: #{tpu_custom_call.1} parent=1 // pred_check_branch
      %57 = sbr.rel (0) target = $region29
    $region28: #{tpu_custom_call.1} parent=1 // pred_region
      %58 = dma.done [#allocation6], 768
    $region29: #{tpu_custom_call.1} parent=1 // pred_fallthru
      _
    %v60 = vld [vmem:[#allocation2] sm:$0xff]
    %v61 = vld [vmem:[#allocation2 + $0x8] sm:$0xff]
    %v62 = vld [vmem:[#allocation5] sm:$0xff]
    %v63 = vld [vmem:[#allocation5 + $0x8] sm:$0xff]
    %vm64 = vcmask 130048
    %v65 = vsel %vm64, %v60, 0.0
    %66 = vadd.xlane.f32.xlu0 %v65
    %v67 = vpop.xlane.xlu0 %66
    %v68 = vsel %vm64, %v61, 0.0
    %69 = vadd.xlane.f32.xlu0 %v68
    %v70 = vpop.xlane.xlu0 %69
    %v71 = vmax.f32 %v67, 1.0
    %v72 = vmax.f32 %v70, 1.0
    %v73 = vrsqrt.pop %v71
    %v74 = vrsqrt.pop %v72
    %v75 = vpack.c.bf16 %v61, %v60
    %v76 = vmul.f32 %v73, %v62
    %v77 = vmul.f32 %v74, %v63
    %v78 = vpack.c.bf16 %v77, %v76
    %v80 = vsel %vm64, %v75, 0
    %82 = vmatprep.subr.bf16.mxu0 0
    %83 = vmatpush1.bf16.msra.mxu0 0
    %84 = vmatprep.subr.bf16.mxu0 0
    %85 = vmatpush1.bf16.msra.mxu0 0
    %86 = vmatprep.subr.bf16.mxu0 0
    %87 = vmatpush1.bf16.msra.mxu0 0
    %88 = vmatprep.subr.bf16.mxu0 0
    %89 = vmatpush1.bf16.msra.mxu0 0
    %90 = vmatprep.subr.bf16.mxu0 0
    %91 = vmatpush1.bf16.msra.mxu0 0
    %92 = vmatprep.subr.bf16.mxu0 0
    %93 = vmatpush1.bf16.msra.mxu0 0
    %94 = vmatprep.subr.bf16.mxu0 0
    %95 = vmatpush1.bf16.msra.mxu0 0
    %96 = vmatprep.subr.bf16.mxu0 0
    %97 = vmatpush1.bf16.msra.mxu0 %v78
    %98 = vmatprep.subr.bf16.mxu0 0
    %99 = vmatpush2.bf16.msra.mxu0 0
    %100 = vmatprep.subr.bf16.mxu0 0
    %101 = vmatpush2.bf16.msra.mxu0 0
    %102 = vmatprep.subr.bf16.mxu0 0
    %103 = vmatpush2.bf16.msra.mxu0 0
    %104 = vmatprep.subr.bf16.mxu0 0
    %105 = vmatpush2.bf16.msra.mxu0 0
    %106 = vmatprep.subr.bf16.mxu0 0
    %107 = vmatpush2.bf16.msra.mxu0 0
    %108 = vmatprep.subr.bf16.mxu0 0
    %109 = vmatpush2.bf16.msra.mxu0 0
    %110 = vmatprep.subr.bf16.mxu0 0
    %111 = vmatpush2.bf16.msra.mxu0 0
    %112 = vmatprep.subr.bf16.mxu0 0
    %113 = vmatpush2.bf16.msra.mxu0 0
    %114 = vmatprep.mubr.bf16.mxu0 0
    %115 = vmatmul.mubr.bf16.gmra.mxu0 %v80
    %v116 = vpop.f32.mrf.mxu0
    %v117 = vadd.f32 0.0, %v116
    %v118 = vpop.f32.mrf.mxu0
    %v119 = vpop.f32.mrf.mxu0
    %v120 = vadd.f32 0.0, %v119
    %v121 = vpop.f32.mrf.mxu0
    %122 = vdwg.mxu0
    %v123 = vmul.f32 %v73, %v117
    %v124 = vmul.f32 %v74, %v120
    %v125 = vmul.f32 %v123, -1.0
    %v126 = vmul.f32 %v124, -1.0
    %v127 = vmul.f32 %v73, %v125
    %v128 = vmul.f32 %v74, %v126
    %v129 = vpack.c.bf16 %v128, %v127
    %130 = vmatprep.subr.bf16.mxu0 0
    %131 = vmatpush1.bf16.msra.mxu0 0
    %132 = vmatprep.subr.bf16.mxu0 0
    %133 = vmatpush1.bf16.msra.mxu0 0
    %134 = vmatprep.subr.bf16.mxu0 0
    %135 = vmatpush1.bf16.msra.mxu0 0
    %136 = vmatprep.subr.bf16.mxu0 0
    %137 = vmatpush1.bf16.msra.mxu0 0
    %138 = vmatprep.subr.bf16.mxu0 0
    %139 = vmatpush1.bf16.msra.mxu0 0
    %140 = vmatprep.subr.bf16.mxu0 0
    %141 = vmatpush1.bf16.msra.mxu0 0
    %142 = vmatprep.subr.bf16.mxu0 0
    %143 = vmatpush1.bf16.msra.mxu0 0
    %144 = vmatprep.subr.bf16.mxu0 0
    %145 = vmatpush1.bf16.msra.mxu0 %v129
    %146 = vmatprep.subr.bf16.mxu0 0
    %147 = vmatpush2.bf16.msra.mxu0 0
    %148 = vmatprep.subr.bf16.mxu0 0
    %149 = vmatpush2.bf16.msra.mxu0 0
    %150 = vmatprep.subr.bf16.mxu0 0
    %151 = vmatpush2.bf16.msra.mxu0 0
    %152 = vmatprep.subr.bf16.mxu0 0
    %153 = vmatpush2.bf16.msra.mxu0 0
    %154 = vmatprep.subr.bf16.mxu0 0
    %155 = vmatpush2.bf16.msra.mxu0 0
    %156 = vmatprep.subr.bf16.mxu0 0
    %157 = vmatpush2.bf16.msra.mxu0 0
    %158 = vmatprep.subr.bf16.mxu0 0
    %159 = vmatpush2.bf16.msra.mxu0 0
    %160 = vmatprep.subr.bf16.mxu0 0
    %161 = vmatpush2.bf16.msra.mxu0 0
    %162 = vmatprep.mubr.bf16.mxu0 0
    %163 = vmatmul.mubr.bf16.gmra.mxu0 %v80
    %v164 = vpop.f32.mrf.mxu0
    %v165 = vadd.f32 0.0, %v164
    %v166 = vpop.f32.mrf.mxu0
    %v167 = vpop.f32.mrf.mxu0
    %v168 = vadd.f32 0.0, %v167
    %v169 = vpop.f32.mrf.mxu0
    %170 = vdwg.mxu0
    %v171 = vmul.f32 %v73, %v165
    %v172 = vmul.f32 %v74, %v168
    %v173 = vmul.f32 %v171, -1.0
    %v174 = vmul.f32 %v172, -1.0
    %v175 = vmul.f32 %v173, 2.0
    %v176 = vmul.f32 %v174, 2.0
    %v177 = vsub.f32 %v175, %v62
    %v178 = vsub.f32 %v176, %v63
    %181 = vrot.lane.b32.xlu0 %v125, 32
    %v182 = vpop.permute.xlu0 %181
    %183 = vrot.lane.b32.xlu0 %v126, 32
    %v184 = vpop.permute.xlu0 %183
    %189 = vrot.lane.b32.xlu0 %v177, 64
    %v190 = vpop.permute.xlu0 %189
    %191 = vrot.lane.b32.xlu0 %v178, 64
    %v192 = vpop.permute.xlu0 %191
    %vm195 = vcmask 261120
    %v196 = vsel %vm195, %v62, %v182
    %v197 = vsel %vm195, %v63, %v184
    %vm198 = vcmask 523264
    %v199 = vsel %vm198, %v196, %v190
    %v200 = vsel %vm198, %v197, %v192
    %v201 = vpack.c.bf16 %v200, %v199
    %v202 = vld [vmem:[#allocation7] sm:$0xf]
    %v203 = vld [vmem:[#allocation7 + $0x4] sm:$0xf]
    %v204 = vld [vmem:[#allocation7 + $0x8] sm:$0xf]
    %v205 = vld [vmem:[#allocation7 + $0xc] sm:$0xf]
    %v206 = vld [vmem:[#allocation7 + $0x10] sm:$0xf]
    %v207 = vld [vmem:[#allocation7 + $0x14] sm:$0xf]
    %v208 = vld [vmem:[#allocation7 + $0x18] sm:$0xf]
    %v209 = vld [vmem:[#allocation7 + $0x1c] sm:$0xf]
    %v210 = vld [vmem:[#allocation7 + $0x20] sm:$0xf]
    %v211 = vld [vmem:[#allocation7 + $0x24] sm:$0xf]
    %v212 = vld [vmem:[#allocation7 + $0x28] sm:$0xf]
    %v213 = vld [vmem:[#allocation7 + $0x2c] sm:$0xf]
    %v214 = vld [vmem:[%s3] sm:$0x1]
    %v216 = vlaneseq
    %v217 = vshrl.u32 %v216, 7
    %v218 = vsub.s32 0, %v217
    %v219 = vrot.slane %v214, %v218
    %v233 = vunpack.c.l.b16 %v202
    %v234 = vunpack.c.l.b16 %v203
    %v235 = vunpack.c.l.b16 %v204
    %v236 = vunpack.c.l.b16 %v205
    %v237 = vunpack.c.l.b16 %v206
    %v238 = vunpack.c.l.b16 %v207
    %v239 = vunpack.c.l.b16 %v208
    %v240 = vunpack.c.l.b16 %v209
    %v241 = vunpack.c.l.b16 %v210
    %v242 = vunpack.c.l.b16 %v211
    %v243 = vunpack.c.l.b16 %v212
    %v244 = vunpack.c.l.b16 %v213
    %v245 = vpack.c.b16 %v234, %v233
    %v246 = vpack.c.b16 %v236, %v235
    %v247 = vpack.c.b16 %v238, %v237
    %v248 = vpack.c.b16 %v240, %v239
    %v249 = vpack.c.b16 %v242, %v241
    %v250 = vpack.c.b16 %v244, %v243
    %vm257 = vcmask 785408
    %v259 = vsel %vm257, %v201, 0
    %261 = vmatprep.subr.bf16.mxu0 0
    %262 = vmatpush1.bf16.msra.mxu0 0
    %263 = vmatprep.subr.bf16.mxu0 0
    %264 = vmatpush1.bf16.msra.mxu0 0
    %265 = vmatprep.subr.bf16.mxu0 0
    %266 = vmatpush1.bf16.msra.mxu0 %v250
    %267 = vmatprep.subr.bf16.mxu0 0
    %268 = vmatpush1.bf16.msra.mxu0 %v249
    %269 = vmatprep.subr.bf16.mxu0 0
    %270 = vmatpush1.bf16.msra.mxu0 %v248
    %271 = vmatprep.subr.bf16.mxu0 0
    %272 = vmatpush1.bf16.msra.mxu0 %v247
    %273 = vmatprep.subr.bf16.mxu0 0
    %274 = vmatpush1.bf16.msra.mxu0 %v246
    %275 = vmatprep.subr.bf16.mxu0 0
    %276 = vmatpush1.bf16.msra.mxu0 %v245
    %277 = vmatprep.subr.bf16.mxu0 0
    %278 = vmatpush2.bf16.msra.mxu0 0
    %279 = vmatprep.subr.bf16.mxu0 0
    %280 = vmatpush2.bf16.msra.mxu0 0
    %281 = vmatprep.subr.bf16.mxu0 0
    %282 = vmatpush2.bf16.msra.mxu0 0
    %283 = vmatprep.subr.bf16.mxu0 0
    %284 = vmatpush2.bf16.msra.mxu0 0
    %285 = vmatprep.subr.bf16.mxu0 0
    %286 = vmatpush2.bf16.msra.mxu0 0
    %287 = vmatprep.subr.bf16.mxu0 0
    %288 = vmatpush2.bf16.msra.mxu0 0
    %289 = vmatprep.subr.bf16.mxu0 0
    %290 = vmatpush2.bf16.msra.mxu0 0
    %291 = vmatprep.subr.bf16.mxu0 0
    %292 = vmatpush2.bf16.msra.mxu0 0
    %293 = vmatprep.mubr.bf16.mxu0 0
    %294 = vmatmul.mubr.bf16.gmra.mxu0 %v259
    %v295 = vpop.f32.mrf.mxu0
    %v296 = vadd.f32 %v219, %v295
    %v297 = vpop.f32.mrf.mxu0
    %v298 = vpop.f32.mrf.mxu0
    %v299 = vadd.f32 %v219, %v298
    %v300 = vpop.f32.mrf.mxu0
    %301 = vdwg.mxu0
    %v302 = vmax.f32 %v296, 0.0
    %v303 = vmax.f32 %v299, 0.0
    %v304 = vsel %vm195, %v62, 0.0
    %v305 = vsel %vm195, %v63, 0.0
    %v306 = vadd.f32 %v302, %v304
    %v307 = vadd.f32 %v303, %v305
    %308 = vst [vmem:[#allocation8] sm:$0xff] %v306
    %309 = vst [vmem:[#allocation8 + $0x8] sm:$0xff] %v307
    // Predicated region
    $region30: #{tpu_custom_call.1} parent=1 // pred_check
      _
    $region31: #{tpu_custom_call.1} parent=1 // pred_check_branch
      %311 = sbr.rel (0) target = $region33
    $region32: #{tpu_custom_call.1} parent=1 // pred_region
      %s313 = ssub.s32 256, 256
      %314 = vsyncadd [#allocation4], %s313
      %s315 = sshll.u32 [#allocation8], 4
      %s316 = int_to_ptr.vmem [resolvable:$true] %s315
      %321 = dma.vmem_to_hbm [thread:$0]  %s316, 256, %s4, [#allocation4], 128, 128, 8
    $region33: #{tpu_custom_call.1} parent=1 // pred_fallthru
      _
    // Predicated region
    $region34: #{tpu_custom_call.1} parent=1 // pred_check
      _
    $region35: #{tpu_custom_call.1} parent=1 // pred_check_branch
      %323 = sbr.rel (0) target = $region37
    $region36: #{tpu_custom_call.1} parent=1 // pred_region
      %324 = dma.done [#allocation4], 256
    $region37: #{tpu_custom_call.1} parent=1 // pred_fallthru
      _
    %325 = vsyncpa [#allocation3], 1
    %326 = vsyncpa [#allocation6], 1
    %327 = vsyncpa [#allocation4], 1

</llo_original>
